<compile_context>
chip_gen: v5e
topology: v5e:2x2
jax: 0.10.0
libtpu: 0.0.40
codegen_flags: <defaults>
</compile_context>

<pallas_src>
import functools

import jax
import jax.numpy as jnp
from jax import lax
from jax.experimental import pallas as pl
from jax.experimental.pallas import tpu as pltpu


# ---------------------------------------------------------------------------
# tiling helper
# ---------------------------------------------------------------------------
def _pick_tile(m, want):
    """Largest tile <= `want` that evenly divides `m` (no ragged blocks, no padding
    copies). With `want <= m // 2` this also keeps >= 2 grid steps so the 'parallel'
    axis can be split across the two TensorCores on v7x."""
    for cand in (2048, 1024, 512, 256, 128, 64, 32, 16, 8):
        if cand <= want and cand <= m and m % cand == 0:
            return cand
    return m


# ---------------------------------------------------------------------------
# Kernel 1: fused matmul + per-channel affine (+ residual) + activation
#   covers Conv1x1+BN, im2col'd Conv3x3+BN(+residual), biased 1x1 conv
# ---------------------------------------------------------------------------
def _matmul_affine_kernel(x_ref, w_ref, s_ref, b_ref, o_ref, *, act):
    acc = jnp.dot(x_ref[...], w_ref[...], preferred_element_type=jnp.float32)
    y = acc * s_ref[...] + b_ref[...]
    if act == "relu":
        y = jnp.maximum(y, 0.0)
    o_ref[...] = y.astype(o_ref.dtype)


def _matmul_affine_res_kernel(x_ref, w_ref, s_ref, b_ref, r_ref, o_ref, *, act):
    acc = jnp.dot(x_ref[...], w_ref[...], preferred_element_type=jnp.float32)
    y = acc * s_ref[...] + b_ref[...] + r_ref[...].astype(jnp.float32)
    if act == "relu":
        y = jnp.maximum(y, 0.0)
    o_ref[...] = y.astype(o_ref.dtype)


def matmul_affine_pallas(x, w, scale, bias, *, act="none", residual=None, tile_m=256):
    """y = act((x @ w) * scale + bias [+ residual]); x:(M,K), w:(K,N), scale/bias:(N,)."""
    M, K = x.shape
    Kw, N = w.shape
    assert K == Kw
    scale2 = jnp.asarray(scale, jnp.float32).reshape(1, N)
    bias2 = jnp.asarray(bias, jnp.float32).reshape(1, N)

    tm = _pick_tile(M, tile_m)
    grid = (M // tm,)

    in_specs = [
        pl.BlockSpec((tm, K), lambda i: (i, 0)),     # row tile, full K
        pl.BlockSpec((K, N), lambda i: (0, 0)),      # whole weight resident
        pl.BlockSpec((1, N), lambda i: (0, 0)),
        pl.BlockSpec((1, N), lambda i: (0, 0)),
    ]
    args = [x, w, scale2, bias2]
    if residual is None:
        kernel = functools.partial(_matmul_affine_kernel, act=act)
    else:
        in_specs.append(pl.BlockSpec((tm, N), lambda i: (i, 0)))
        args.append(residual)
        kernel = functools.partial(_matmul_affine_res_kernel, act=act)

    return pl.pallas_call(
        kernel,
        out_shape=jax.ShapeDtypeStruct((M, N), x.dtype),
        grid_spec=pltpu.PrefetchScalarGridSpec(
            num_scalar_prefetch=0,
            grid=grid,
            in_specs=in_specs,
            out_specs=pl.BlockSpec((tm, N), lambda i: (i, 0)),
        ),
        compiler_params=pltpu.CompilerParams(dimension_semantics=("parallel",)),
    )(*args)


# ---------------------------------------------------------------------------
# Kernel 2: softmax over groups of `n_tasks` consecutive channels, times concat
#   == softmax(dim=2) of the (B, C//N, N, H, W) view in the PyTorch code
# ---------------------------------------------------------------------------
def _task_softmax_mul_kernel(s_ref, c_ref, g_ref, o_ref):
    s = s_ref[...].astype(jnp.float32)
    # Per-row max is a valid stabilizer for every per-group softmax in the row.
    e = jnp.exp(s - jnp.max(s, axis=-1, keepdims=True))
    # Broadcast each group's sum back to all its channels via a (C, C) indicator matmul.
    denom = jnp.dot(e, g_ref[...], preferred_element_type=jnp.float32)
    o_ref[...] = ((e / denom) * c_ref[...].astype(jnp.float32)).astype(o_ref.dtype)


def task_softmax_mul_pallas(shared, concat, n_tasks, *, tile_m=256):
    M, C = shared.shape
    g = jnp.arange(C) // n_tasks
    gmat = (g[:, None] == g[None, :]).astype(jnp.float32)   # (C, C) group indicator

    tm = _pick_tile(M, tile_m)
    grid = (M // tm,)
    return pl.pallas_call(
        _task_softmax_mul_kernel,
        out_shape=jax.ShapeDtypeStruct((M, C), shared.dtype),
        grid_spec=pltpu.PrefetchScalarGridSpec(
            num_scalar_prefetch=0,
            grid=grid,
            in_specs=[
                pl.BlockSpec((tm, C), lambda i: (i, 0)),
                pl.BlockSpec((tm, C), lambda i: (i, 0)),
                pl.BlockSpec((C, C), lambda i: (0, 0)),
            ],
            out_specs=pl.BlockSpec((tm, C), lambda i: (i, 0)),
        ),
        compiler_params=pltpu.CompilerParams(dimension_semantics=("parallel",)),
    )(shared, concat, gmat)


# ---------------------------------------------------------------------------
# Kernel 3: global average pool over H*W (per batch, per channel)
# ---------------------------------------------------------------------------
def _avgpool_kernel(x_ref, o_ref):
    x = x_ref[0]                                             # (HW, C)
    o_ref[0] = jnp.mean(x, axis=0, keepdims=True).astype(o_ref.dtype)


def global_avg_pool_pallas(x_nhwc):
    B, H, W, C = x_nhwc.shape
    HW = H * W
    x3 = x_nhwc.reshape(B, HW, C)
    out = pl.pallas_call(
        _avgpool_kernel,
        out_shape=jax.ShapeDtypeStruct((B, 1, C), x_nhwc.dtype),
        grid_spec=pltpu.PrefetchScalarGridSpec(
            num_scalar_prefetch=0,
            grid=(B,),
            in_specs=[pl.BlockSpec((1, HW, C), lambda b: (b, 0, 0))],
            out_specs=pl.BlockSpec((1, 1, C), lambda b: (b, 0, 0)),
        ),
        compiler_params=pltpu.CompilerParams(dimension_semantics=("parallel",)),
    )(x3)
    return out.reshape(B, C)


# ---------------------------------------------------------------------------
# Kernel 4: SE gating (x * gate) + per-task residual add
# ---------------------------------------------------------------------------
def _se_apply_kernel(x_ref, z_ref, r_ref, o_ref):
    # x/r blocks: (1, thw, C); z block: (1, 1, C) per-batch channel gate.
    o_ref[0] = x_ref[0] * z_ref[0] + r_ref[0]


def se_apply_pallas(shared_nhwc, gate_bc, feat_nhwc, *, tile_hw=1024):
    B, H, W, C = shared_nhwc.shape
    HW = H * W
    x3 = shared_nhwc.reshape(B, HW, C)
    r3 = feat_nhwc.reshape(B, HW, C)
    z3 = gate_bc.reshape(B, 1, C).astype(shared_nhwc.dtype)
    thw = _pick_tile(HW, tile_hw)
    grid = (B, HW // thw)
    out = pl.pallas_call(
        _se_apply_kernel,
        out_shape=jax.ShapeDtypeStruct((B, HW, C), shared_nhwc.dtype),
        grid_spec=pltpu.PrefetchScalarGridSpec(
            num_scalar_prefetch=0,
            grid=grid,
            in_specs=[
                pl.BlockSpec((1, thw, C), lambda b, h: (b, h, 0)),
                pl.BlockSpec((1, 1, C), lambda b, h: (b, 0, 0)),
                pl.BlockSpec((1, thw, C), lambda b, h: (b, h, 0)),
            ],
            out_specs=pl.BlockSpec((1, thw, C), lambda b, h: (b, h, 0)),
        ),
        compiler_params=pltpu.CompilerParams(
            dimension_semantics=("parallel", "parallel")),
    )(x3, z3, r3)
    return out.reshape(B, H, W, C)


# ---------------------------------------------------------------------------
# conv wrappers (layout plumbing in JAX, compute in the Pallas matmul kernel)
# ---------------------------------------------------------------------------
def im2col_3x3(x_nhwc):
    # TODO(synk): the 3x3 halo gather is plain JAX data movement; BlockSpec cannot
    # express overlapping windows — a production kernel would DMA halo tiles manually.
    B, H, W, C = x_nhwc.shape
    xp = jnp.pad(x_nhwc, ((0, 0), (1, 1), (1, 1), (0, 0)))
    patches = [xp[:, dh:dh + H, dw:dw + W, :] for dh in range(3) for dw in range(3)]
    return jnp.concatenate(patches, axis=-1)          # (B, H, W, 9*C), (kh, kw, cin) order


def conv3x3_bn_pallas(x_nhwc, w_hwio, scale, bias, *, act, residual=None):
    B, H, W, Cin = x_nhwc.shape
    Cout = w_hwio.shape[-1]
    patches = im2col_3x3(x_nhwc).reshape(B * H * W, 9 * Cin)
    w_flat = w_hwio.reshape(9 * Cin, Cout)            # matches (kh, kw, cin) patch order
    y = matmul_affine_pallas(patches, w_flat, scale, bias, act=act, residual=residual)
    return y.reshape(B, H, W, Cout)


def conv1x1_affine_pallas(x_nhwc, w_io, scale, bias, *, act="none"):
    B, H, W, Cin = x_nhwc.shape
    Cout = w_io.shape[-1]
    y = matmul_affine_pallas(x_nhwc.reshape(B * H * W, Cin), w_io, scale, bias, act=act)
    return y.reshape(B, H, W, Cout)


def residual_conv_pallas(x_nhwc, p):
    """ResidualConv: relu(bn2(conv2(relu(bn1(conv1(x))))) + downsample_or_identity(x))."""
    B, H, W, _ = x_nhwc.shape
    h = conv3x3_bn_pallas(x_nhwc, p["w1"], p["s1"], p["b1"], act="relu")
    if "wd" in p:
        identity = conv1x1_affine_pallas(x_nhwc, p["wd"], p["sd"], p["bd"], act="none")
    else:
        identity = x_nhwc
    cout = p["w2"].shape[-1]
    return conv3x3_bn_pallas(
        h, p["w2"], p["s2"], p["b2"], act="relu",
        residual=identity.reshape(B * H * W, cout))


# ---------------------------------------------------------------------------
# FeaturePropagation forward (Pallas path)
# ---------------------------------------------------------------------------
def feature_propagation_pallas(x, params, tasks):
    """x: {'features_<task>': (B, Ct, H, W)} NCHW  ->  {task: (B, Ct, H, W)}."""
    n_tasks = len(tasks)
    feats_nhwc = {t: jnp.transpose(x[f"features_{t}"], (0, 2, 3, 1)) for t in tasks}
    concat = jnp.concatenate([feats_nhwc[t] for t in tasks], axis=-1)   # (B, H, W, C)
    B, H, W, C = concat.shape

    # non_linear: ResidualConv(C->C/4) -> ResidualConv(C/4->C/4) -> Conv1x1(C/4->C, bias)
    h = residual_conv_pallas(concat, params["rc1"])
    h = residual_conv_pallas(h, params["rc2"])
    shared = conv1x1_affine_pallas(
        h, params["final_w"], jnp.ones((C,), jnp.float32), params["final_b"], act="none")

    # softmax over the task axis of shared.view(B, C//N, N, H, W), reweight concat
    masked = task_softmax_mul_pallas(
        shared.reshape(B * H * W, C), concat.reshape(B * H * W, C), n_tasks)
    masked = masked.reshape(B, H, W, C)

    # dimensionality_reduction: ResidualConv(C -> per_task_channels)
    red = residual_conv_pallas(masked, params["rc_red"])                # (B, H, W, Ct)

    # per-task SqueezeAndExcitation(red) + task residual
    pooled = global_avg_pool_pallas(red)                                # (B, Ct)
    out = {}
    for t in tasks:
        p = params["se"][t]
        # TODO(synk): the SE squeeze MLP is (B,Ct)@(Ct,Ct//16) with hidden dim 2 —
        # far below MXU/(8,128) tile granularity, so it stays in plain JAX.
        hid = jnp.maximum(pooled @ p["w1"] + p["b1"], 0.0)
        gate = jax.nn.sigmoid(hid @ p["w2"] + p["b2"])                  # (B, Ct)
        o = se_apply_pallas(red, gate, feats_nhwc[t])
        out[t] = jnp.transpose(o, (0, 3, 1, 2))
    return out
    # TODO(synk): mha=True (InterTaskWindowAttnetion) branch not implemented;
    # module default is mha=False so the forward never takes it.


# ---------------------------------------------------------------------------
# parameters (deterministic, PRNGKey(0))
# ---------------------------------------------------------------------------
def _bn_fold(key, c):
    # Inference-mode BatchNorm folded into per-channel scale/bias
    # (running_mean=0, running_var=1 as at PyTorch init).
    # TODO(synk): training-mode batch statistics are not implemented.
    kg, kb = jax.random.split(key)
    gamma = 1.0 + 0.1 * jax.random.normal(kg, (c,), jnp.float32)
    beta = 0.1 * jax.random.normal(kb, (c,), jnp.float32)
    eps = 1e-5
    return gamma / jnp.sqrt(1.0 + eps), beta


def _make_rc_params(key, cin, cout, with_down):
    k = jax.random.split(key, 6)
    p = {
        "w1": jax.random.normal(k[0], (3, 3, cin, cout), jnp.float32) * (9 * cin) ** -0.5,
        "w2": jax.random.normal(k[1], (3, 3, cout, cout), jnp.float32) * (9 * cout) ** -0.5,
    }
    p["s1"], p["b1"] = _bn_fold(k[2], cout)
    p["s2"], p["b2"] = _bn_fold(k[3], cout)
    if with_down:
        p["wd"] = jax.random.normal(k[4], (cin, cout), jnp.float32) * cin ** -0.5
        p["sd"], p["bd"] = _bn_fold(k[5], cout)
    return p


def _make_se_params(key, c, r=16):
    hid = max(c // r, 1)
    k = jax.random.split(key, 4)
    return {
        "w1": jax.random.normal(k[0], (c, hid), jnp.float32) * c ** -0.5,
        "b1": 0.1 * jax.random.normal(k[1], (hid,), jnp.float32),
        "w2": jax.random.normal(k[2], (hid, c), jnp.float32) * hid ** -0.5,
        "b2": 0.1 * jax.random.normal(k[3], (c,), jnp.float32),
    }


def make_params(key, tasks, per_task_channels):
    n = len(tasks)
    C = n * per_task_channels
    C4 = C // 4
    ks = jax.random.split(key, 5 + n)
    return {
        "rc1": _make_rc_params(ks[0], C, C4, True),
        "rc2": _make_rc_params(ks[1], C4, C4, False),
        "final_w": jax.random.normal(ks[2], (C4, C), jnp.float32) * C4 ** -0.5,
        "final_b": 0.1 * jax.random.normal(ks[3], (C,), jnp.float32),
        "rc_red": _make_rc_params(ks[4], C, per_task_channels, True),
        "se": {t: _make_se_params(ks[5 + i], per_task_channels)
               for i, t in enumerate(tasks)},
    }


# ---------------------------------------------------------------------------
# pure-JAX reference (for correctness check)
# ---------------------------------------------------------------------------
_PREC = lax.Precision.HIGHEST


def _conv3x3_ref(x, w_hwio):
    return lax.conv_general_dilated(
        x, w_hwio, window_strides=(1, 1), padding=((1, 1), (1, 1)),
        dimension_numbers=("NHWC", "HWIO", "NHWC"), precision=_PREC)


def _conv1x1_ref(x, w_io):
    return jnp.einsum("bhwc,cd->bhwd", x, w_io, precision=_PREC)


def _residual_conv_ref(x, p):
    h = jnp.maximum(_conv3x3_ref(x, p["w1"]) * p["s1"] + p["b1"], 0.0)
    out = _conv3x3_ref(h, p["w2"]) * p["s2"] + p["b2"]
    identity = (_conv1x1_ref(x, p["wd"]) * p["sd"] + p["bd"]) if "wd" in p else x
    return jnp.maximum(out + identity, 0.0)


def feature_propagation_ref(x, params, tasks):
    n = len(tasks)
    feats_nhwc = {t: jnp.transpose(x[f"features_{t}"], (0, 2, 3, 1)) for t in tasks}
    concat = jnp.concatenate([feats_nhwc[t] for t in tasks], axis=-1)
    B, H, W, C = concat.shape
    h = _residual_conv_ref(concat, params["rc1"])
    h = _residual_conv_ref(h, params["rc2"])
    shared = _conv1x1_ref(h, params["final_w"]) + params["final_b"]
    mask = jax.nn.softmax(shared.reshape(B, H, W, C // n, n), axis=-1)
    masked = (mask * concat.reshape(B, H, W, C // n, n)).reshape(B, H, W, C)
    red = _residual_conv_ref(masked, params["rc_red"])
    pooled = jnp.mean(red, axis=(1, 2))
    out = {}
    for t in tasks:
        p = params["se"][t]
        gate = jax.nn.sigmoid(
            jnp.maximum(pooled @ p["w1"] + p["b1"], 0.0) @ p["w2"] + p["b2"])
        o = red * gate[:, None, None, :] + feats_nhwc[t]
        out[t] = jnp.transpose(o, (0, 3, 1, 2))
    return out


# ---------------------------------------------------------------------------
if __name__ == "__main__":
    key = jax.random.PRNGKey(0)
    tasks = ("seg", "depth")
    per_task_channels = 32          # shared_channels = 64, shared_channels // 4 = 16
    B, H, W = 2, 16, 16

    k_feat, k_par = jax.random.split(key)
    fkeys = jax.random.split(k_feat, len(tasks))
    x = {f"features_{t}": jax.random.normal(
            fkeys[i], (B, per_task_channels, H, W), jnp.float32)
         for i, t in enumerate(tasks)}
    params = make_params(k_par, tasks, per_task_channels)

    out = feature_propagation_pallas(x, params, tasks)
    out = jax.block_until_ready(out)

    ref = feature_propagation_ref(x, params, tasks)
    for t in tasks:
        assert out[t].shape == x[f"features_{t}"].shape
        assert out[t].dtype == x[f"features_{t}"].dtype
        assert jnp.allclose(out[t], ref[t], atol=2e-3, rtol=2e-3), (
            t, float(jnp.max(jnp.abs(out[t] - ref[t]))))

    print("KERNEL_OK")
</pallas_src>

<mosaic_0001>
module attributes {stable_mosaic.version = 11 : i64} {
  func.func @_matmul_affine_kernel(%arg0: i32, %arg1: memref<256x576xf32, #tpu.memory_space<vmem>>, %arg2: memref<576x16xf32, #tpu.memory_space<vmem>>, %arg3: memref<1x16xf32, #tpu.memory_space<vmem>>, %arg4: memref<1x16xf32, #tpu.memory_space<vmem>>, %arg5: memref<256x16xf32, #tpu.memory_space<vmem>>) attributes {dimension_semantics = [#tpu.dimension_semantics<parallel>], iteration_bounds = array<i64: 2>, scalar_prefetch = 0 : i64, scratch_operands = 0 : i64, tpu.core_type = #tpu.core_type<tc>, window_params = [{transform_indices = @transform_0, window_bounds = array<i64: 256, 576>}, {pipeline_mode = #tpu.pipeline_mode<synchronous>, transform_indices = @transform_1, window_bounds = array<i64: 576, 16>}, {pipeline_mode = #tpu.pipeline_mode<synchronous>, transform_indices = @transform_2, window_bounds = array<i64: 1, 16>}, {pipeline_mode = #tpu.pipeline_mode<synchronous>, transform_indices = @transform_3, window_bounds = array<i64: 1, 16>}, {transform_indices = @transform_4, window_bounds = array<i64: 256, 16>}]} {
    %c0 = arith.constant 0 : index
    %c0_0 = arith.constant 0 : index
    %0 = vector.load %arg1[%c0, %c0_0] : memref<256x576xf32, #tpu.memory_space<vmem>>, vector<256x576xf32>
    %c0_1 = arith.constant 0 : index
    %c0_2 = arith.constant 0 : index
    %1 = vector.load %arg2[%c0_1, %c0_2] : memref<576x16xf32, #tpu.memory_space<vmem>>, vector<576x16xf32>
    %cst = arith.constant dense<0.000000e+00> : vector<256x16xf32>
    %2 = tpu.matmul %0, %1, %cst {dimension_numbers = #tpu.dot_dimension_numbers<[1], [0], [0], [1], [0, 0, 1, 1], [], []>} : vector<256x576xf32>, vector<576x16xf32>, vector<256x16xf32> -> vector<256x16xf32>
    %c0_3 = arith.constant 0 : index
    %c0_4 = arith.constant 0 : index
    %3 = vector.load %arg3[%c0_3, %c0_4] : memref<1x16xf32, #tpu.memory_space<vmem>>, vector<1x16xf32>
    %4 = vector.broadcast %3 : vector<1x16xf32> to vector<256x16xf32>
    %5 = arith.mulf %2, %4 : vector<256x16xf32>
    %c0_5 = arith.constant 0 : index
    %c0_6 = arith.constant 0 : index
    %6 = vector.load %arg4[%c0_5, %c0_6] : memref<1x16xf32, #tpu.memory_space<vmem>>, vector<1x16xf32>
    %7 = vector.broadcast %6 : vector<1x16xf32> to vector<256x16xf32>
    %8 = arith.addf %5, %7 : vector<256x16xf32>
    %cst_7 = arith.constant 0.000000e+00 : f32
    %9 = vector.broadcast %cst_7 : f32 to vector<256x16xf32>
    %10 = arith.maximumf %8, %9 : vector<256x16xf32>
    %c0_8 = arith.constant 0 : index
    %c0_9 = arith.constant 0 : index
    %11 = vector.load %arg5[%c0_8, %c0_9] : memref<256x16xf32, #tpu.memory_space<vmem>>, vector<256x16xf32>
    tpu.vector_store %arg5[%c0_8, %c0_9], %10 {strides = array<i32>} : memref<256x16xf32, #tpu.memory_space<vmem>>, vector<256x16xf32>,
    return
  }
  func.func @transform_0(%arg0: i32) -> (i32, i32) {
    %c0_i32 = arith.constant 0 : i32
    %c0_i32_0 = arith.constant 0 : i32
    return %arg0, %c0_i32 : i32, i32
  }
  func.func @transform_1(%arg0: i32) -> (i32, i32) {
    %c0_i32 = arith.constant 0 : i32
    %c0_i32_0 = arith.constant 0 : i32
    %c0_i32_1 = arith.constant 0 : i32
    return %c0_i32, %c0_i32_0 : i32, i32
  }
  func.func @transform_2(%arg0: i32) -> (i32, i32) {
    %c0_i32 = arith.constant 0 : i32
    %c0_i32_0 = arith.constant 0 : i32
    %c0_i32_1 = arith.constant 0 : i32
    return %c0_i32, %c0_i32_0 : i32, i32
  }
  func.func @transform_3(%arg0: i32) -> (i32, i32) {
    %c0_i32 = arith.constant 0 : i32
    %c0_i32_0 = arith.constant 0 : i32
    %c0_i32_1 = arith.constant 0 : i32
    return %c0_i32, %c0_i32_0 : i32, i32
  }
  func.func @transform_4(%arg0: i32) -> (i32, i32) {
    %c0_i32 = arith.constant 0 : i32
    %c0_i32_0 = arith.constant 0 : i32
    return %arg0, %c0_i32 : i32, i32
  }
}

</mosaic_0001>

<llo_original>
// kernel: tpu_custom_call.1
$region0: #{tpu_custom_call.1}
  #allocation0 [shape = 'u32[]', space=smem, size = 0x4, offset = 0x4, fixed_abs, tag = 'smem constant byte address 0x4 - core index']
  #allocation1 [shape = 'u32[72,128]{1,0:T(1,128)}', space=vmem, size = 0x9000, scoped, tag = 'internal scratch']
  %s0 = inlined_call_operand.vmem [shape: f32[512,576], index: 0, kind: input, shape index: {}]
  %s1 = inlined_call_operand.vmem [shape: f32[576,16], index: 1, kind: input, shape index: {}]
  %s2 = inlined_call_operand.vmem [shape: f32[1,16], index: 2, kind: input, shape index: {}]
  %s3 = inlined_call_operand.vmem [shape: f32[1,16], index: 3, kind: input, shape index: {}]
  %s4 = inlined_call_operand.vmem [shape: f32[512,16], index: 4, kind: output, shape index: {}]
  %s5 = sld [smem:[#allocation0]]
  $region49: #{tpu_custom_call.1} parent=0
    _
  %s7 = ssub.s32 1, %s5
  %s8 = scalar_select 0, %s7, %s5
  loop: start=0, step=1, limit=4
  $region2: #{tpu_custom_call.1} parent=0 // loop_pre_header
    _
  $region3: #{tpu_custom_call.1} parent=0 // loop_header
    %s10 = sphi 0, %s14
    %p11 = scmp.ge.s32.totalorder %s10, 4
    %s20 = sphi 0, %s22
    %s23 = sphi 0, %s20
    %s24 = sphi 0, %s23
    %s40 = sphi 0, %s24
    %s44 = sphi 0, %s44
    %s46 = sphi 0, %s44
    %s47 = sphi 0, %s46
    %s61 = sphi 0, %s47
    %s65 = sphi 0, %s65
    %s67 = sphi 0, %s65
    %s68 = sphi 0, %s67
    %s82 = sphi 0, %s68
    %s86 = sphi 0, %s86
    %s88 = sphi 0, %s86
    %s89 = sphi 0, %s88
    %s103 = sphi 0, %s89
    %s109 = sphi 0, %s111
    %s112 = sphi 0, %s109
    %s113 = sphi 0, %s112
    %s129 = sphi 0, %s113
  $region4: #{tpu_custom_call.1} parent=0 // loop_header_branch
    %13 = sbr.rel (%p11) target = $region8
  $region5: #{tpu_custom_call.1} parent=0 // loop_body
    %s15 = ssub.s32 %s10, 1
    %s16 = ssub.s32 %s10, 2
    %s17 = sadd.s32 %s10, 1
    %s18 = ssub.s32 %s10, %s17
    %p19 = scmp.eq.s32.totalorder %s18, 0
    %s21 = sadd.s32 %s20, 1
    %s22 = scalar_select %p19, %s20, %s21
    %p25 = pneg %p19
    %p26 = scmp.eq.s32.totalorder %s10, 1
    %p27 = por %p25, %p26
    %p28 = scmp.ne.s32.totalorder %s20, %s23
    %p29 = scmp.eq.s32.totalorder %s10, 0
    %p30 = por %p28, %p29
    %p31 = scmp.ne.s32.totalorder %s20, %s23
    %p32 = scmp.eq.s32.totalorder %s15, 1
    %p33 = por %p31, %p32
    %p34 = scmp.ne.s32.totalorder %s23, %s24
    %p35 = scmp.eq.s32.totalorder %s15, 0
    %p36 = por %p34, %p35
    %p37 = scmp.ne.s32.totalorder %s23, %s24
    %p38 = scmp.eq.s32.totalorder %s16, 1
    %p39 = por %p37, %p38
    %p41 = scmp.ne.s32.totalorder %s24, %s40
    %p42 = scmp.eq.s32.totalorder %s16, 0
    %p43 = por %p41, %p42
    %s45 = sadd.s32 %s44, 1
    %p48 = scmp.eq.s32.totalorder %s10, 1
    %p49 = scmp.ne.s32.totalorder %s44, %s46
    %p50 = scmp.eq.s32.totalorder %s10, 0
    %p51 = por %p49, %p50
    %p52 = scmp.ne.s32.totalorder %s44, %s46
    %p53 = scmp.eq.s32.totalorder %s15, 1
    %p54 = por %p52, %p53
    %p55 = scmp.ne.s32.totalorder %s46, %s47
    %p56 = scmp.eq.s32.totalorder %s15, 0
    %p57 = por %p55, %p56
    %p58 = scmp.ne.s32.totalorder %s46, %s47
    %p59 = scmp.eq.s32.totalorder %s16, 1
    %p60 = por %p58, %p59
    %p62 = scmp.ne.s32.totalorder %s47, %s61
    %p63 = scmp.eq.s32.totalorder %s16, 0
    %p64 = por %p62, %p63
    %s66 = sadd.s32 %s65, 1
    %p69 = scmp.eq.s32.totalorder %s10, 1
    %p70 = scmp.ne.s32.totalorder %s65, %s67
    %p71 = scmp.eq.s32.totalorder %s10, 0
    %p72 = por %p70, %p71
    %p73 = scmp.ne.s32.totalorder %s65, %s67
    %p74 = scmp.eq.s32.totalorder %s15, 1
    %p75 = por %p73, %p74
    %p76 = scmp.ne.s32.totalorder %s67, %s68
    %p77 = scmp.eq.s32.totalorder %s15, 0
    %p78 = por %p76, %p77
    %p79 = scmp.ne.s32.totalorder %s67, %s68
    %p80 = scmp.eq.s32.totalorder %s16, 1
    %p81 = por %p79, %p80
    %p83 = scmp.ne.s32.totalorder %s68, %s82
    %p84 = scmp.eq.s32.totalorder %s16, 0
    %p85 = por %p83, %p84
    %s87 = sadd.s32 %s86, 1
    %p90 = scmp.eq.s32.totalorder %s10, 1
    %p91 = scmp.ne.s32.totalorder %s86, %s88
    %p92 = scmp.eq.s32.totalorder %s10, 0
    %p93 = por %p91, %p92
    %p94 = scmp.ne.s32.totalorder %s86, %s88
    %p95 = scmp.eq.s32.totalorder %s15, 1
    %p96 = por %p94, %p95
    %p97 = scmp.ne.s32.totalorder %s88, %s89
    %p98 = scmp.eq.s32.totalorder %s15, 0
    %p99 = por %p97, %p98
    %p100 = scmp.ne.s32.totalorder %s88, %s89
    %p101 = scmp.eq.s32.totalorder %s16, 1
    %p102 = por %p100, %p101
    %p104 = scmp.ne.s32.totalorder %s89, %s103
    %p105 = scmp.eq.s32.totalorder %s16, 0
    %p106 = por %p104, %p105
    %s107 = ssub.s32 %s10, %s17
    %p108 = scmp.eq.s32.totalorder %s107, 0
    %s110 = sadd.s32 %s109, 1
    %s111 = scalar_select %p108, %s109, %s110
    %p114 = pneg %p108
    %p115 = scmp.eq.s32.totalorder %s10, 1
    %p116 = por %p114, %p115
    %p117 = scmp.ne.s32.totalorder %s109, %s112
    %p118 = scmp.eq.s32.totalorder %s10, 0
    %p119 = por %p117, %p118
    %p120 = scmp.ne.s32.totalorder %s109, %s112
    %p121 = scmp.eq.s32.totalorder %s15, 1
    %p122 = por %p120, %p121
    %p123 = scmp.ne.s32.totalorder %s112, %s113
    %p124 = scmp.eq.s32.totalorder %s15, 0
    %p125 = por %p123, %p124
    %p126 = scmp.ne.s32.totalorder %s112, %s113
    %p127 = scmp.eq.s32.totalorder %s16, 1
    %p128 = por %p126, %p127
    %p130 = scmp.ne.s32.totalorder %s113, %s129
    %p131 = scmp.eq.s32.totalorder %s16, 0
    %p132 = por %p130, %p131
    %p133 = scmp.le.s32.totalorder 1, %s10
    %p134 = scmp.lt.s32.totalorder %s10, 3
    %p135 = pnand %p133, %p134
    %p136 = pneg %p135
    // Predicated region
    $region9: #{tpu_custom_call.1} parent=5 // pred_check
      _
    $region10: #{tpu_custom_call.1} parent=5 // pred_check_branch
      %138 = sbr.rel (%p135) target = $region12
    $region11: #{tpu_custom_call.1} parent=5 // pred_region
      %s139 = ssub.s32 %s10, 1
      // Predicated region
      $region13: #{tpu_custom_call.1} parent=11 // pred_check
        %p140 = pneg %p57
      $region14: #{tpu_custom_call.1} parent=11 // pred_check_branch
        %142 = sbr.rel (%p140) target = $region16
      $region15: #{tpu_custom_call.1} parent=11 // pred_region
        _
      $region16: #{tpu_custom_call.1} parent=11 // pred_fallthru
        _
      // Predicated region
      $region17: #{tpu_custom_call.1} parent=11 // pred_check
        %p143 = pneg %p78
      $region18: #{tpu_custom_call.1} parent=11 // pred_check_branch
        %145 = sbr.rel (%p143) target = $region20
      $region19: #{tpu_custom_call.1} parent=11 // pred_region
        _
      $region20: #{tpu_custom_call.1} parent=11 // pred_fallthru
        _
      // Predicated region
      $region21: #{tpu_custom_call.1} parent=11 // pred_check
        %p146 = pneg %p99
      $region22: #{tpu_custom_call.1} parent=11 // pred_check_branch
        %148 = sbr.rel (%p146) target = $region24
      $region23: #{tpu_custom_call.1} parent=11 // pred_region
        _
      $region24: #{tpu_custom_call.1} parent=11 // pred_fallthru
        _
    $region12: #{tpu_custom_call.1} parent=5 // pred_fallthru
      _
    %p149 = scmp.lt.s32.totalorder %s10, 2
    // Predicated region
    $region25: #{tpu_custom_call.1} parent=5 // pred_check
      %p150 = pneg %p149
    $region26: #{tpu_custom_call.1} parent=5 // pred_check_branch
      %152 = sbr.rel (%p150) target = $region28
    $region27: #{tpu_custom_call.1} parent=5 // pred_region
      // Predicated region
      $region29: #{tpu_custom_call.1} parent=27 // pred_check
        %p153 = pneg %p30
      $region30: #{tpu_custom_call.1} parent=27 // pred_check_branch
        %155 = sbr.rel (%p153) target = $region32
      $region31: #{tpu_custom_call.1} parent=27 // pred_region
        %s156 = smul.u32 32, %s10
        %p157 = scmp.lt.s32.totalorder %s156, 63
        %s158 = scalar_select %p157, %s156, 63
        %s159 = smul.addr %s158, 5
        %s160 = smul.addr %s159, 8
        %s161 = scalar_lea.vmem %s0, %s160
        %s162 = smul.u32 32, %s10
      $region32: #{tpu_custom_call.1} parent=27 // pred_fallthru
        _
    $region28: #{tpu_custom_call.1} parent=5 // pred_fallthru
      _
    %p163 = scmp.le.s32.totalorder 1, %s10
    %p164 = scmp.lt.s32.totalorder %s10, 3
    %p165 = pnand %p163, %p164
    %p166 = pneg %p165
    // Predicated region
    $region33: #{tpu_custom_call.1} parent=5 // pred_check
      _
    $region34: #{tpu_custom_call.1} parent=5 // pred_check_branch
      %168 = sbr.rel (%p165) target = $region36
    $region35: #{tpu_custom_call.1} parent=5 // pred_region
      %s169 = ssub.s32 %s10, 1
      %s170 = smul.u32 32, %s15
      %p171 = scmp.lt.s32.totalorder %s170, 63
      %s172 = scalar_select %p171, %s170, 63
      %s173 = smul.addr %s172, 5
      %s174 = smul.addr %s173, 8
      %s175 = scalar_lea.vmem %s0, %s174
      %p176 = pneg %p36
      %p177 = pneg %p33
      %p178 = pneg %p57
      %p179 = pneg %p54
      %p180 = pneg %p78
      %p181 = pneg %p75
      %p182 = pneg %p99
      %p183 = pneg %p96
      %p184 = pneg %p125
      %p185 = pneg %p122
      %s186 = smul.u32 32, %s15
      %p187 = scmp.lt.s32.totalorder %s186, 63
      %s188 = scalar_select %p187, %s186, 63
      %s189 = smul.addr %s188, 8
      %s190 = scalar_lea.vmem %s4, %s189
      %s191 = smul.u32 32, %s15
      %p192 = scmp.lt.s32.totalorder %s191, 63
      %s193 = scalar_select %p192, %s191, 63
      %s194 = smul.addr %s193, 5
      %s195 = smul.addr %s194, 8
      %s196 = scalar_lea.vmem %s0, %s195
      %s197 = smul.u32 32, %s15
      %s198 = smul.u32 32, %s15
      %p199 = scmp.lt.s32.totalorder %s198, 63
      %s200 = scalar_select %p199, %s198, 63
      %s201 = smul.addr %s200, 8
      %s202 = scalar_lea.vmem %s4, %s201
      %s203 = smul.u32 32, %s15
      %v204 = vld [vmem:[%s196] sm:$0xff]
      %v205 = vld [vmem:[%s196 + $0x8] sm:$0xff]
      %v206 = vld [vmem:[%s196 + $0x10] sm:$0xff]
      %v207 = vld [vmem:[%s196 + $0x18] sm:$0xff]
      %v208 = vld [vmem:[%s196 + $0x20] sm:$0xff]
      %v209 = vld [vmem:[%s196 + $0x28] sm:$0xff]
      %v210 = vld [vmem:[%s196 + $0x30] sm:$0xff]
      %v211 = vld [vmem:[%s196 + $0x38] sm:$0xff]
      %v212 = vld [vmem:[%s196 + $0x40] sm:$0xff]
      %v213 = vld [vmem:[%s196 + $0x48] sm:$0xff]
      %v214 = vld [vmem:[%s196 + $0x50] sm:$0xff]
      %v215 = vld [vmem:[%s196 + $0x58] sm:$0xff]
      %v216 = vld [vmem:[%s196 + $0x60] sm:$0xff]
      %v217 = vld [vmem:[%s196 + $0x68] sm:$0xff]
      %v218 = vld [vmem:[%s196 + $0x70] sm:$0xff]
      %v219 = vld [vmem:[%s196 + $0x78] sm:$0xff]
      %v220 = vld [vmem:[%s196 + $0x80] sm:$0xff]
      %v221 = vld [vmem:[%s196 + $0x88] sm:$0xff]
      %v222 = vld [vmem:[%s196 + $0x90] sm:$0xff]
      %v223 = vld [vmem:[%s196 + $0x98] sm:$0xff]
      %v224 = vld [vmem:[%s196 + $0xa0] sm:$0xff]
      %v225 = vld [vmem:[%s196 + $0xa8] sm:$0xff]
      %v226 = vld [vmem:[%s196 + $0xb0] sm:$0xff]
      %v227 = vld [vmem:[%s196 + $0xb8] sm:$0xff]
      %v228 = vld [vmem:[%s196 + $0xc0] sm:$0xff]
      %v229 = vld [vmem:[%s196 + $0xc8] sm:$0xff]
      %v230 = vld [vmem:[%s196 + $0xd0] sm:$0xff]
      %v231 = vld [vmem:[%s196 + $0xd8] sm:$0xff]
      %v232 = vld [vmem:[%s196 + $0xe0] sm:$0xff]
      %v233 = vld [vmem:[%s196 + $0xe8] sm:$0xff]
      %v234 = vld [vmem:[%s196 + $0xf0] sm:$0xff]
      %v235 = vld [vmem:[%s196 + $0xf8] sm:$0xff]
      %v236 = vld [vmem:[%s196 + $0x100] sm:$0xff]
      %v237 = vld [vmem:[%s196 + $0x108] sm:$0xff]
      %v238 = vld [vmem:[%s196 + $0x110] sm:$0xff]
      %v239 = vld [vmem:[%s196 + $0x118] sm:$0xff]
      %v240 = vld [vmem:[%s196 + $0x120] sm:$0xff]
      %v241 = vld [vmem:[%s196 + $0x128] sm:$0xff]
      %v242 = vld [vmem:[%s196 + $0x130] sm:$0xff]
      %v243 = vld [vmem:[%s196 + $0x138] sm:$0xff]
      %v244 = vld [vmem:[%s196 + $0x140] sm:$0xff]
      %v245 = vld [vmem:[%s196 + $0x148] sm:$0xff]
      %v246 = vld [vmem:[%s196 + $0x150] sm:$0xff]
      %v247 = vld [vmem:[%s196 + $0x158] sm:$0xff]
      %v248 = vld [vmem:[%s196 + $0x160] sm:$0xff]
      %v249 = vld [vmem:[%s196 + $0x168] sm:$0xff]
      %v250 = vld [vmem:[%s196 + $0x170] sm:$0xff]
      %v251 = vld [vmem:[%s196 + $0x178] sm:$0xff]
      %v252 = vld [vmem:[%s196 + $0x180] sm:$0xff]
      %v253 = vld [vmem:[%s196 + $0x188] sm:$0xff]
      %v254 = vld [vmem:[%s196 + $0x190] sm:$0xff]
      %v255 = vld [vmem:[%s196 + $0x198] sm:$0xff]
      %v256 = vld [vmem:[%s196 + $0x1a0] sm:$0xff]
      %v257 = vld [vmem:[%s196 + $0x1a8] sm:$0xff]
      %v258 = vld [vmem:[%s196 + $0x1b0] sm:$0xff]
      %v259 = vld [vmem:[%s196 + $0x1b8] sm:$0xff]
      %v260 = vld [vmem:[%s196 + $0x1c0] sm:$0xff]
      %v261 = vld [vmem:[%s196 + $0x1c8] sm:$0xff]
      %v262 = vld [vmem:[%s196 + $0x1d0] sm:$0xff]
      %v263 = vld [vmem:[%s196 + $0x1d8] sm:$0xff]
      %v264 = vld [vmem:[%s196 + $0x1e0] sm:$0xff]
      %v265 = vld [vmem:[%s196 + $0x1e8] sm:$0xff]
      %v266 = vld [vmem:[%s196 + $0x1f0] sm:$0xff]
      %v267 = vld [vmem:[%s196 + $0x1f8] sm:$0xff]
      %v268 = vld [vmem:[%s196 + $0x200] sm:$0xff]
      %v269 = vld [vmem:[%s196 + $0x208] sm:$0xff]
      %v270 = vld [vmem:[%s196 + $0x210] sm:$0xff]
      %v271 = vld [vmem:[%s196 + $0x218] sm:$0xff]
      %v272 = vld [vmem:[%s196 + $0x220] sm:$0xff]
      %v273 = vld [vmem:[%s196 + $0x228] sm:$0xff]
      %v274 = vld [vmem:[%s196 + $0x230] sm:$0xff]
      %v275 = vld [vmem:[%s196 + $0x238] sm:$0xff]
      %v276 = vld [vmem:[%s196 + $0x240] sm:$0xff]
      %v277 = vld [vmem:[%s196 + $0x248] sm:$0xff]
      %v278 = vld [vmem:[%s196 + $0x250] sm:$0xff]
      %v279 = vld [vmem:[%s196 + $0x258] sm:$0xff]
      %v280 = vld [vmem:[%s196 + $0x260] sm:$0xff]
      %v281 = vld [vmem:[%s196 + $0x268] sm:$0xff]
      %v282 = vld [vmem:[%s196 + $0x270] sm:$0xff]
      %v283 = vld [vmem:[%s196 + $0x278] sm:$0xff]
      %v284 = vld [vmem:[%s196 + $0x280] sm:$0xff]
      %v285 = vld [vmem:[%s196 + $0x288] sm:$0xff]
      %v286 = vld [vmem:[%s196 + $0x290] sm:$0xff]
      %v287 = vld [vmem:[%s196 + $0x298] sm:$0xff]
      %v288 = vld [vmem:[%s196 + $0x2a0] sm:$0xff]
      %v289 = vld [vmem:[%s196 + $0x2a8] sm:$0xff]
      %v290 = vld [vmem:[%s196 + $0x2b0] sm:$0xff]
      %v291 = vld [vmem:[%s196 + $0x2b8] sm:$0xff]
      %v292 = vld [vmem:[%s196 + $0x2c0] sm:$0xff]
      %v293 = vld [vmem:[%s196 + $0x2c8] sm:$0xff]
      %v294 = vld [vmem:[%s196 + $0x2d0] sm:$0xff]
      %v295 = vld [vmem:[%s196 + $0x2d8] sm:$0xff]
      %v296 = vld [vmem:[%s196 + $0x2e0] sm:$0xff]
      %v297 = vld [vmem:[%s196 + $0x2e8] sm:$0xff]
      %v298 = vld [vmem:[%s196 + $0x2f0] sm:$0xff]
      %v299 = vld [vmem:[%s196 + $0x2f8] sm:$0xff]
      %v300 = vld [vmem:[%s196 + $0x300] sm:$0xff]
      %v301 = vld [vmem:[%s196 + $0x308] sm:$0xff]
      %v302 = vld [vmem:[%s196 + $0x310] sm:$0xff]
      %v303 = vld [vmem:[%s196 + $0x318] sm:$0xff]
      %v304 = vld [vmem:[%s196 + $0x320] sm:$0xff]
      %v305 = vld [vmem:[%s196 + $0x328] sm:$0xff]
      %v306 = vld [vmem:[%s196 + $0x330] sm:$0xff]
      %v307 = vld [vmem:[%s196 + $0x338] sm:$0xff]
      %v308 = vld [vmem:[%s196 + $0x340] sm:$0xff]
      %v309 = vld [vmem:[%s196 + $0x348] sm:$0xff]
      %v310 = vld [vmem:[%s196 + $0x350] sm:$0xff]
      %v311 = vld [vmem:[%s196 + $0x358] sm:$0xff]
      %v312 = vld [vmem:[%s196 + $0x360] sm:$0xff]
      %v313 = vld [vmem:[%s196 + $0x368] sm:$0xff]
      %v314 = vld [vmem:[%s196 + $0x370] sm:$0xff]
      %v315 = vld [vmem:[%s196 + $0x378] sm:$0xff]
      %v316 = vld [vmem:[%s196 + $0x380] sm:$0xff]
      %v317 = vld [vmem:[%s196 + $0x388] sm:$0xff]
      %v318 = vld [vmem:[%s196 + $0x390] sm:$0xff]
      %v319 = vld [vmem:[%s196 + $0x398] sm:$0xff]
      %v320 = vld [vmem:[%s196 + $0x3a0] sm:$0xff]
      %v321 = vld [vmem:[%s196 + $0x3a8] sm:$0xff]
      %v322 = vld [vmem:[%s196 + $0x3b0] sm:$0xff]
      %v323 = vld [vmem:[%s196 + $0x3b8] sm:$0xff]
      %v324 = vld [vmem:[%s196 + $0x3c0] sm:$0xff]
      %v325 = vld [vmem:[%s196 + $0x3c8] sm:$0xff]
      %v326 = vld [vmem:[%s196 + $0x3d0] sm:$0xff]
      %v327 = vld [vmem:[%s196 + $0x3d8] sm:$0xff]
      %v328 = vld [vmem:[%s196 + $0x3e0] sm:$0xff]
      %v329 = vld [vmem:[%s196 + $0x3e8] sm:$0xff]
      %v330 = vld [vmem:[%s196 + $0x3f0] sm:$0xff]
      %v331 = vld [vmem:[%s196 + $0x3f8] sm:$0xff]
      %v332 = vld [vmem:[%s196 + $0x400] sm:$0xff]
      %v333 = vld [vmem:[%s196 + $0x408] sm:$0xff]
      %v334 = vld [vmem:[%s196 + $0x410] sm:$0xff]
      %v335 = vld [vmem:[%s196 + $0x418] sm:$0xff]
      %v336 = vld [vmem:[%s196 + $0x420] sm:$0xff]
      %v337 = vld [vmem:[%s196 + $0x428] sm:$0xff]
      %v338 = vld [vmem:[%s196 + $0x430] sm:$0xff]
      %v339 = vld [vmem:[%s196 + $0x438] sm:$0xff]
      %v340 = vld [vmem:[%s196 + $0x440] sm:$0xff]
      %v341 = vld [vmem:[%s196 + $0x448] sm:$0xff]
      %v342 = vld [vmem:[%s196 + $0x450] sm:$0xff]
      %v343 = vld [vmem:[%s196 + $0x458] sm:$0xff]
      %v344 = vld [vmem:[%s196 + $0x460] sm:$0xff]
      %v345 = vld [vmem:[%s196 + $0x468] sm:$0xff]
      %v346 = vld [vmem:[%s196 + $0x470] sm:$0xff]
      %v347 = vld [vmem:[%s196 + $0x478] sm:$0xff]
      %v348 = vld [vmem:[%s196 + $0x480] sm:$0xff]
      %v349 = vld [vmem:[%s196 + $0x488] sm:$0xff]
      %v350 = vld [vmem:[%s196 + $0x490] sm:$0xff]
      %v351 = vld [vmem:[%s196 + $0x498] sm:$0xff]
      %v352 = vld [vmem:[%s196 + $0x4a0] sm:$0xff]
      %v353 = vld [vmem:[%s196 + $0x4a8] sm:$0xff]
      %v354 = vld [vmem:[%s196 + $0x4b0] sm:$0xff]
      %v355 = vld [vmem:[%s196 + $0x4b8] sm:$0xff]
      %v356 = vld [vmem:[%s196 + $0x4c0] sm:$0xff]
      %v357 = vld [vmem:[%s196 + $0x4c8] sm:$0xff]
      %v358 = vld [vmem:[%s196 + $0x4d0] sm:$0xff]
      %v359 = vld [vmem:[%s196 + $0x4d8] sm:$0xff]
      %v360 = vld [vmem:[%s196 + $0x4e0] sm:$0xff]
      %v361 = vld [vmem:[%s196 + $0x4e8] sm:$0xff]
      %v362 = vld [vmem:[%s196 + $0x4f0] sm:$0xff]
      %v363 = vld [vmem:[%s196 + $0x4f8] sm:$0xff]
      %v364 = vld [vmem:[%s1] sm:$0xff]
      %v365 = vld [vmem:[%s1 + $0x8] sm:$0xff]
      %v366 = vld [vmem:[%s1 + $0x10] sm:$0xff]
      %v367 = vld [vmem:[%s1 + $0x18] sm:$0xff]
      %v368 = vld [vmem:[%s1 + $0x20] sm:$0xff]
      %v369 = vld [vmem:[%s1 + $0x28] sm:$0xff]
      %v370 = vld [vmem:[%s1 + $0x30] sm:$0xff]
      %v371 = vld [vmem:[%s1 + $0x38] sm:$0xff]
      %v372 = vld [vmem:[%s1 + $0x40] sm:$0xff]
      %v373 = vld [vmem:[%s1 + $0x48] sm:$0xff]
      %v374 = vld [vmem:[%s1 + $0x50] sm:$0xff]
      %v375 = vld [vmem:[%s1 + $0x58] sm:$0xff]
      %v376 = vld [vmem:[%s1 + $0x60] sm:$0xff]
      %v377 = vld [vmem:[%s1 + $0x68] sm:$0xff]
      %v378 = vld [vmem:[%s1 + $0x70] sm:$0xff]
      %v379 = vld [vmem:[%s1 + $0x78] sm:$0xff]
      %v380 = vld [vmem:[%s1 + $0x80] sm:$0xff]
      %v381 = vld [vmem:[%s1 + $0x88] sm:$0xff]
      %v382 = vld [vmem:[%s1 + $0x90] sm:$0xff]
      %v383 = vld [vmem:[%s1 + $0x98] sm:$0xff]
      %v384 = vld [vmem:[%s1 + $0xa0] sm:$0xff]
      %v385 = vld [vmem:[%s1 + $0xa8] sm:$0xff]
      %v386 = vld [vmem:[%s1 + $0xb0] sm:$0xff]
      %v387 = vld [vmem:[%s1 + $0xb8] sm:$0xff]
      %v388 = vld [vmem:[%s1 + $0xc0] sm:$0xff]
      %v389 = vld [vmem:[%s1 + $0xc8] sm:$0xff]
      %v390 = vld [vmem:[%s1 + $0xd0] sm:$0xff]
      %v391 = vld [vmem:[%s1 + $0xd8] sm:$0xff]
      %v392 = vld [vmem:[%s1 + $0xe0] sm:$0xff]
      %v393 = vld [vmem:[%s1 + $0xe8] sm:$0xff]
      %v394 = vld [vmem:[%s1 + $0xf0] sm:$0xff]
      %v395 = vld [vmem:[%s1 + $0xf8] sm:$0xff]
      %v396 = vld [vmem:[%s1 + $0x100] sm:$0xff]
      %v397 = vld [vmem:[%s1 + $0x108] sm:$0xff]
      %v398 = vld [vmem:[%s1 + $0x110] sm:$0xff]
      %v399 = vld [vmem:[%s1 + $0x118] sm:$0xff]
      %v400 = vld [vmem:[%s1 + $0x120] sm:$0xff]
      %v401 = vld [vmem:[%s1 + $0x128] sm:$0xff]
      %v402 = vld [vmem:[%s1 + $0x130] sm:$0xff]
      %v403 = vld [vmem:[%s1 + $0x138] sm:$0xff]
      %v404 = vld [vmem:[%s1 + $0x140] sm:$0xff]
      %v405 = vld [vmem:[%s1 + $0x148] sm:$0xff]
      %v406 = vld [vmem:[%s1 + $0x150] sm:$0xff]
      %v407 = vld [vmem:[%s1 + $0x158] sm:$0xff]
      %v408 = vld [vmem:[%s1 + $0x160] sm:$0xff]
      %v409 = vld [vmem:[%s1 + $0x168] sm:$0xff]
      %v410 = vld [vmem:[%s1 + $0x170] sm:$0xff]
      %v411 = vld [vmem:[%s1 + $0x178] sm:$0xff]
      %v412 = vld [vmem:[%s1 + $0x180] sm:$0xff]
      %v413 = vld [vmem:[%s1 + $0x188] sm:$0xff]
      %v414 = vld [vmem:[%s1 + $0x190] sm:$0xff]
      %v415 = vld [vmem:[%s1 + $0x198] sm:$0xff]
      %v416 = vld [vmem:[%s1 + $0x1a0] sm:$0xff]
      %v417 = vld [vmem:[%s1 + $0x1a8] sm:$0xff]
      %v418 = vld [vmem:[%s1 + $0x1b0] sm:$0xff]
      %v419 = vld [vmem:[%s1 + $0x1b8] sm:$0xff]
      %v420 = vld [vmem:[%s1 + $0x1c0] sm:$0xff]
      %v421 = vld [vmem:[%s1 + $0x1c8] sm:$0xff]
      %v422 = vld [vmem:[%s1 + $0x1d0] sm:$0xff]
      %v423 = vld [vmem:[%s1 + $0x1d8] sm:$0xff]
      %v424 = vld [vmem:[%s1 + $0x1e0] sm:$0xff]
      %v425 = vld [vmem:[%s1 + $0x1e8] sm:$0xff]
      %v426 = vld [vmem:[%s1 + $0x1f0] sm:$0xff]
      %v427 = vld [vmem:[%s1 + $0x1f8] sm:$0xff]
      %v428 = vld [vmem:[%s1 + $0x200] sm:$0xff]
      %v429 = vld [vmem:[%s1 + $0x208] sm:$0xff]
      %v430 = vld [vmem:[%s1 + $0x210] sm:$0xff]
      %v431 = vld [vmem:[%s1 + $0x218] sm:$0xff]
      %v432 = vld [vmem:[%s1 + $0x220] sm:$0xff]
      %v433 = vld [vmem:[%s1 + $0x228] sm:$0xff]
      %v434 = vld [vmem:[%s1 + $0x230] sm:$0xff]
      %v435 = vld [vmem:[%s1 + $0x238] sm:$0xff]
      %vm436 = vcmask 523264
      %v438 = vsel %vm436, %v208, 0
      %v441 = vsel %vm436, %v213, 0
      %v444 = vsel %vm436, %v218, 0
      %v447 = vsel %vm436, %v223, 0
      %v450 = vsel %vm436, %v228, 0
      %v453 = vsel %vm436, %v233, 0
      %v456 = vsel %vm436, %v238, 0
      %v459 = vsel %vm436, %v243, 0
      %v462 = vsel %vm436, %v248, 0
      %v465 = vsel %vm436, %v253, 0
      %v468 = vsel %vm436, %v258, 0
      %v471 = vsel %vm436, %v263, 0
      %v474 = vsel %vm436, %v268, 0
      %v477 = vsel %vm436, %v273, 0
      %v480 = vsel %vm436, %v278, 0
      %v483 = vsel %vm436, %v283, 0
      %v486 = vsel %vm436, %v288, 0
      %v489 = vsel %vm436, %v293, 0
      %v492 = vsel %vm436, %v298, 0
      %v495 = vsel %vm436, %v303, 0
      %v498 = vsel %vm436, %v308, 0
      %v501 = vsel %vm436, %v313, 0
      %v504 = vsel %vm436, %v318, 0
      %v507 = vsel %vm436, %v323, 0
      %v510 = vsel %vm436, %v328, 0
      %v513 = vsel %vm436, %v333, 0
      %v516 = vsel %vm436, %v338, 0
      %v519 = vsel %vm436, %v343, 0
      %v522 = vsel %vm436, %v348, 0
      %v525 = vsel %vm436, %v353, 0
      %v528 = vsel %vm436, %v358, 0
      %v531 = vsel %vm436, %v363, 0
      %533 = vmatpush.msra.mxu0 %v379
      %534 = vmatpush.msra.mxu0 %v378
      %535 = vmatpush.msra.mxu0 %v377
      %536 = vmatpush.msra.mxu0 %v376
      %537 = vmatpush.msra.mxu0 %v375
      %538 = vmatpush.msra.mxu0 %v374
      %539 = vmatpush.msra.mxu0 %v373
      %540 = vmatpush.msra.mxu0 %v372
      %541 = vmatpush.msra.mxu0 %v371
      %542 = vmatpush.msra.mxu0 %v370
      %543 = vmatpush.msra.mxu0 %v369
      %544 = vmatpush.msra.mxu0 %v368
      %545 = vmatpush.msra.mxu0 %v367
      %546 = vmatpush.msra.mxu0 %v366
      %547 = vmatpush.msra.mxu0 %v365
      %548 = vmatpush.msra.mxu0 %v364
      %549 = vmatmul.f32.gmra.mxu0 %v204
      %v550 = vpop.f32.mrf.mxu0
      %v551 = vadd.f32 0.0, %v550
      %552 = vmatmul.f32.gmra.mxu0 %v209
      %v553 = vpop.f32.mrf.mxu0
      %v554 = vadd.f32 0.0, %v553
      %555 = vmatmul.f32.gmra.mxu0 %v214
      %v556 = vpop.f32.mrf.mxu0
      %v557 = vadd.f32 0.0, %v556
      %558 = vmatmul.f32.gmra.mxu0 %v219
      %v559 = vpop.f32.mrf.mxu0
      %v560 = vadd.f32 0.0, %v559
      %561 = vmatmul.f32.gmra.mxu0 %v224
      %v562 = vpop.f32.mrf.mxu0
      %v563 = vadd.f32 0.0, %v562
      %564 = vmatmul.f32.gmra.mxu0 %v229
      %v565 = vpop.f32.mrf.mxu0
      %v566 = vadd.f32 0.0, %v565
      %567 = vmatmul.f32.gmra.mxu0 %v234
      %v568 = vpop.f32.mrf.mxu0
      %v569 = vadd.f32 0.0, %v568
      %570 = vmatmul.f32.gmra.mxu0 %v239
      %v571 = vpop.f32.mrf.mxu0
      %v572 = vadd.f32 0.0, %v571
      %573 = vmatmul.f32.gmra.mxu0 %v244
      %v574 = vpop.f32.mrf.mxu0
      %v575 = vadd.f32 0.0, %v574
      %576 = vmatmul.f32.gmra.mxu0 %v249
      %v577 = vpop.f32.mrf.mxu0
      %v578 = vadd.f32 0.0, %v577
      %579 = vmatmul.f32.gmra.mxu0 %v254
      %v580 = vpop.f32.mrf.mxu0
      %v581 = vadd.f32 0.0, %v580
      %582 = vmatmul.f32.gmra.mxu0 %v259
      %v583 = vpop.f32.mrf.mxu0
      %v584 = vadd.f32 0.0, %v583
      %585 = vmatmul.f32.gmra.mxu0 %v264
      %v586 = vpop.f32.mrf.mxu0
      %v587 = vadd.f32 0.0, %v586
      %588 = vmatmul.f32.gmra.mxu0 %v269
      %v589 = vpop.f32.mrf.mxu0
      %v590 = vadd.f32 0.0, %v589
      %591 = vmatmul.f32.gmra.mxu0 %v274
      %v592 = vpop.f32.mrf.mxu0
      %v593 = vadd.f32 0.0, %v592
      %594 = vmatmul.f32.gmra.mxu0 %v279
      %v595 = vpop.f32.mrf.mxu0
      %v596 = vadd.f32 0.0, %v595
      %597 = vmatmul.f32.gmra.mxu0 %v284
      %v598 = vpop.f32.mrf.mxu0
      %v599 = vadd.f32 0.0, %v598
      %600 = vmatmul.f32.gmra.mxu0 %v289
      %v601 = vpop.f32.mrf.mxu0
      %v602 = vadd.f32 0.0, %v601
      %603 = vmatmul.f32.gmra.mxu0 %v294
      %v604 = vpop.f32.mrf.mxu0
      %v605 = vadd.f32 0.0, %v604
      %606 = vmatmul.f32.gmra.mxu0 %v299
      %v607 = vpop.f32.mrf.mxu0
      %v608 = vadd.f32 0.0, %v607
      %609 = vmatmul.f32.gmra.mxu0 %v304
      %v610 = vpop.f32.mrf.mxu0
      %v611 = vadd.f32 0.0, %v610
      %612 = vmatmul.f32.gmra.mxu0 %v309
      %v613 = vpop.f32.mrf.mxu0
      %v614 = vadd.f32 0.0, %v613
      %615 = vmatmul.f32.gmra.mxu0 %v314
      %v616 = vpop.f32.mrf.mxu0
      %v617 = vadd.f32 0.0, %v616
      %618 = vmatmul.f32.gmra.mxu0 %v319
      %v619 = vpop.f32.mrf.mxu0
      %v620 = vadd.f32 0.0, %v619
      %621 = vmatmul.f32.gmra.mxu0 %v324
      %v622 = vpop.f32.mrf.mxu0
      %v623 = vadd.f32 0.0, %v622
      %624 = vmatmul.f32.gmra.mxu0 %v329
      %v625 = vpop.f32.mrf.mxu0
      %v626 = vadd.f32 0.0, %v625
      %627 = vmatmul.f32.gmra.mxu0 %v334
      %v628 = vpop.f32.mrf.mxu0
      %v629 = vadd.f32 0.0, %v628
      %630 = vmatmul.f32.gmra.mxu0 %v339
      %v631 = vpop.f32.mrf.mxu0
      %v632 = vadd.f32 0.0, %v631
      %633 = vmatmul.f32.gmra.mxu0 %v344
      %v634 = vpop.f32.mrf.mxu0
      %v635 = vadd.f32 0.0, %v634
      %636 = vmatmul.f32.gmra.mxu0 %v349
      %v637 = vpop.f32.mrf.mxu0
      %v638 = vadd.f32 0.0, %v637
      %639 = vmatmul.f32.gmra.mxu0 %v354
      %v640 = vpop.f32.mrf.mxu0
      %v641 = vadd.f32 0.0, %v640
      %642 = vmatmul.f32.gmra.mxu0 %v359
      %v643 = vpop.f32.mrf.mxu0
      %v644 = vadd.f32 0.0, %v643
      %645 = vdwg.mxu0
      %646 = vmatpush.msra.mxu0 %v395
      %647 = vmatpush.msra.mxu0 %v394
      %648 = vmatpush.msra.mxu0 %v393
      %649 = vmatpush.msra.mxu0 %v392
      %650 = vmatpush.msra.mxu0 %v391
      %651 = vmatpush.msra.mxu0 %v390
      %652 = vmatpush.msra.mxu0 %v389
      %653 = vmatpush.msra.mxu0 %v388
      %654 = vmatpush.msra.mxu0 %v387
      %655 = vmatpush.msra.mxu0 %v386
      %656 = vmatpush.msra.mxu0 %v385
      %657 = vmatpush.msra.mxu0 %v384
      %658 = vmatpush.msra.mxu0 %v383
      %659 = vmatpush.msra.mxu0 %v382
      %660 = vmatpush.msra.mxu0 %v381
      %661 = vmatpush.msra.mxu0 %v380
      %662 = vmatmul.f32.gmra.mxu0 %v205
      %v663 = vpop.f32.mrf.mxu0
      %v664 = vadd.f32 %v551, %v663
      %665 = vmatmul.f32.gmra.mxu0 %v210
      %v666 = vpop.f32.mrf.mxu0
      %v667 = vadd.f32 %v554, %v666
      %668 = vmatmul.f32.gmra.mxu0 %v215
      %v669 = vpop.f32.mrf.mxu0
      %v670 = vadd.f32 %v557, %v669
      %671 = vmatmul.f32.gmra.mxu0 %v220
      %v672 = vpop.f32.mrf.mxu0
      %v673 = vadd.f32 %v560, %v672
      %674 = vmatmul.f32.gmra.mxu0 %v225
      %v675 = vpop.f32.mrf.mxu0
      %v676 = vadd.f32 %v563, %v675
      %677 = vmatmul.f32.gmra.mxu0 %v230
      %v678 = vpop.f32.mrf.mxu0
      %v679 = vadd.f32 %v566, %v678
      %680 = vmatmul.f32.gmra.mxu0 %v235
      %v681 = vpop.f32.mrf.mxu0
      %v682 = vadd.f32 %v569, %v681
      %683 = vmatmul.f32.gmra.mxu0 %v240
      %v684 = vpop.f32.mrf.mxu0
      %v685 = vadd.f32 %v572, %v684
      %686 = vmatmul.f32.gmra.mxu0 %v245
      %v687 = vpop.f32.mrf.mxu0
      %v688 = vadd.f32 %v575, %v687
      %689 = vmatmul.f32.gmra.mxu0 %v250
      %v690 = vpop.f32.mrf.mxu0
      %v691 = vadd.f32 %v578, %v690
      %692 = vmatmul.f32.gmra.mxu0 %v255
      %v693 = vpop.f32.mrf.mxu0
      %v694 = vadd.f32 %v581, %v693
      %695 = vmatmul.f32.gmra.mxu0 %v260
      %v696 = vpop.f32.mrf.mxu0
      %v697 = vadd.f32 %v584, %v696
      %698 = vmatmul.f32.gmra.mxu0 %v265
      %v699 = vpop.f32.mrf.mxu0
      %v700 = vadd.f32 %v587, %v699
      %701 = vmatmul.f32.gmra.mxu0 %v270
      %v702 = vpop.f32.mrf.mxu0
      %v703 = vadd.f32 %v590, %v702
      %704 = vmatmul.f32.gmra.mxu0 %v275
      %v705 = vpop.f32.mrf.mxu0
      %v706 = vadd.f32 %v593, %v705
      %707 = vmatmul.f32.gmra.mxu0 %v280
      %v708 = vpop.f32.mrf.mxu0
      %v709 = vadd.f32 %v596, %v708
      %710 = vmatmul.f32.gmra.mxu0 %v285
      %v711 = vpop.f32.mrf.mxu0
      %v712 = vadd.f32 %v599, %v711
      %713 = vmatmul.f32.gmra.mxu0 %v290
      %v714 = vpop.f32.mrf.mxu0
      %v715 = vadd.f32 %v602, %v714
      %716 = vmatmul.f32.gmra.mxu0 %v295
      %v717 = vpop.f32.mrf.mxu0
      %v718 = vadd.f32 %v605, %v717
      %719 = vmatmul.f32.gmra.mxu0 %v300
      %v720 = vpop.f32.mrf.mxu0
      %v721 = vadd.f32 %v608, %v720
      %722 = vmatmul.f32.gmra.mxu0 %v305
      %v723 = vpop.f32.mrf.mxu0
      %v724 = vadd.f32 %v611, %v723
      %725 = vmatmul.f32.gmra.mxu0 %v310
      %v726 = vpop.f32.mrf.mxu0
      %v727 = vadd.f32 %v614, %v726
      %728 = vmatmul.f32.gmra.mxu0 %v315
      %v729 = vpop.f32.mrf.mxu0
      %v730 = vadd.f32 %v617, %v729
      %731 = vmatmul.f32.gmra.mxu0 %v320
      %v732 = vpop.f32.mrf.mxu0
      %v733 = vadd.f32 %v620, %v732
      %734 = vmatmul.f32.gmra.mxu0 %v325
      %v735 = vpop.f32.mrf.mxu0
      %v736 = vadd.f32 %v623, %v735
      %737 = vmatmul.f32.gmra.mxu0 %v330
      %v738 = vpop.f32.mrf.mxu0
      %v739 = vadd.f32 %v626, %v738
      %740 = vmatmul.f32.gmra.mxu0 %v335
      %v741 = vpop.f32.mrf.mxu0
      %v742 = vadd.f32 %v629, %v741
      %743 = vmatmul.f32.gmra.mxu0 %v340
      %v744 = vpop.f32.mrf.mxu0
      %v745 = vadd.f32 %v632, %v744
      %746 = vmatmul.f32.gmra.mxu0 %v345
      %v747 = vpop.f32.mrf.mxu0
      %v748 = vadd.f32 %v635, %v747
      %749 = vmatmul.f32.gmra.mxu0 %v350
      %v750 = vpop.f32.mrf.mxu0
      %v751 = vadd.f32 %v638, %v750
      %752 = vmatmul.f32.gmra.mxu0 %v355
      %v753 = vpop.f32.mrf.mxu0
      %v754 = vadd.f32 %v641, %v753
      %755 = vmatmul.f32.gmra.mxu0 %v360
      %v756 = vpop.f32.mrf.mxu0
      %v757 = vadd.f32 %v644, %v756
      %758 = vdwg.mxu0
      %759 = vmatpush.msra.mxu0 %v411
      %760 = vmatpush.msra.mxu0 %v410
      %761 = vmatpush.msra.mxu0 %v409
      %762 = vmatpush.msra.mxu0 %v408
      %763 = vmatpush.msra.mxu0 %v407
      %764 = vmatpush.msra.mxu0 %v406
      %765 = vmatpush.msra.mxu0 %v405
      %766 = vmatpush.msra.mxu0 %v404
      %767 = vmatpush.msra.mxu0 %v403
      %768 = vmatpush.msra.mxu0 %v402
      %769 = vmatpush.msra.mxu0 %v401
      %770 = vmatpush.msra.mxu0 %v400
      %771 = vmatpush.msra.mxu0 %v399
      %772 = vmatpush.msra.mxu0 %v398
      %773 = vmatpush.msra.mxu0 %v397
      %774 = vmatpush.msra.mxu0 %v396
      %775 = vmatmul.f32.gmra.mxu0 %v206
      %v776 = vpop.f32.mrf.mxu0
      %v777 = vadd.f32 %v664, %v776
      %778 = vmatmul.f32.gmra.mxu0 %v211
      %v779 = vpop.f32.mrf.mxu0
      %v780 = vadd.f32 %v667, %v779
      %781 = vmatmul.f32.gmra.mxu0 %v216
      %v782 = vpop.f32.mrf.mxu0
      %v783 = vadd.f32 %v670, %v782
      %784 = vmatmul.f32.gmra.mxu0 %v221
      %v785 = vpop.f32.mrf.mxu0
      %v786 = vadd.f32 %v673, %v785
      %787 = vmatmul.f32.gmra.mxu0 %v226
      %v788 = vpop.f32.mrf.mxu0
      %v789 = vadd.f32 %v676, %v788
      %790 = vmatmul.f32.gmra.mxu0 %v231
      %v791 = vpop.f32.mrf.mxu0
      %v792 = vadd.f32 %v679, %v791
      %793 = vmatmul.f32.gmra.mxu0 %v236
      %v794 = vpop.f32.mrf.mxu0
      %v795 = vadd.f32 %v682, %v794
      %796 = vmatmul.f32.gmra.mxu0 %v241
      %v797 = vpop.f32.mrf.mxu0
      %v798 = vadd.f32 %v685, %v797
      %799 = vmatmul.f32.gmra.mxu0 %v246
      %v800 = vpop.f32.mrf.mxu0
      %v801 = vadd.f32 %v688, %v800
      %802 = vmatmul.f32.gmra.mxu0 %v251
      %v803 = vpop.f32.mrf.mxu0
      %v804 = vadd.f32 %v691, %v803
      %805 = vmatmul.f32.gmra.mxu0 %v256
      %v806 = vpop.f32.mrf.mxu0
      %v807 = vadd.f32 %v694, %v806
      %808 = vmatmul.f32.gmra.mxu0 %v261
      %v809 = vpop.f32.mrf.mxu0
      %v810 = vadd.f32 %v697, %v809
      %811 = vmatmul.f32.gmra.mxu0 %v266
      %v812 = vpop.f32.mrf.mxu0
      %v813 = vadd.f32 %v700, %v812
      %814 = vmatmul.f32.gmra.mxu0 %v271
      %v815 = vpop.f32.mrf.mxu0
      %v816 = vadd.f32 %v703, %v815
      %817 = vmatmul.f32.gmra.mxu0 %v276
      %v818 = vpop.f32.mrf.mxu0
      %v819 = vadd.f32 %v706, %v818
      %820 = vmatmul.f32.gmra.mxu0 %v281
      %v821 = vpop.f32.mrf.mxu0
      %v822 = vadd.f32 %v709, %v821
      %823 = vmatmul.f32.gmra.mxu0 %v286
      %v824 = vpop.f32.mrf.mxu0
      %v825 = vadd.f32 %v712, %v824
      %826 = vmatmul.f32.gmra.mxu0 %v291
      %v827 = vpop.f32.mrf.mxu0
      %v828 = vadd.f32 %v715, %v827
      %829 = vmatmul.f32.gmra.mxu0 %v296
      %v830 = vpop.f32.mrf.mxu0
      %v831 = vadd.f32 %v718, %v830
      %832 = vmatmul.f32.gmra.mxu0 %v301
      %v833 = vpop.f32.mrf.mxu0
      %v834 = vadd.f32 %v721, %v833
      %835 = vmatmul.f32.gmra.mxu0 %v306
      %v836 = vpop.f32.mrf.mxu0
      %v837 = vadd.f32 %v724, %v836
      %838 = vmatmul.f32.gmra.mxu0 %v311
      %v839 = vpop.f32.mrf.mxu0
      %v840 = vadd.f32 %v727, %v839
      %841 = vmatmul.f32.gmra.mxu0 %v316
      %v842 = vpop.f32.mrf.mxu0
      %v843 = vadd.f32 %v730, %v842
      %844 = vmatmul.f32.gmra.mxu0 %v321
      %v845 = vpop.f32.mrf.mxu0
      %v846 = vadd.f32 %v733, %v845
      %847 = vmatmul.f32.gmra.mxu0 %v326
      %v848 = vpop.f32.mrf.mxu0
      %v849 = vadd.f32 %v736, %v848
      %850 = vmatmul.f32.gmra.mxu0 %v331
      %v851 = vpop.f32.mrf.mxu0
      %v852 = vadd.f32 %v739, %v851
      %853 = vmatmul.f32.gmra.mxu0 %v336
      %v854 = vpop.f32.mrf.mxu0
      %v855 = vadd.f32 %v742, %v854
      %856 = vmatmul.f32.gmra.mxu0 %v341
      %v857 = vpop.f32.mrf.mxu0
      %v858 = vadd.f32 %v745, %v857
      %859 = vmatmul.f32.gmra.mxu0 %v346
      %v860 = vpop.f32.mrf.mxu0
      %v861 = vadd.f32 %v748, %v860
      %862 = vmatmul.f32.gmra.mxu0 %v351
      %v863 = vpop.f32.mrf.mxu0
      %v864 = vadd.f32 %v751, %v863
      %865 = vmatmul.f32.gmra.mxu0 %v356
      %v866 = vpop.f32.mrf.mxu0
      %v867 = vadd.f32 %v754, %v866
      %868 = vmatmul.f32.gmra.mxu0 %v361
      %v869 = vpop.f32.mrf.mxu0
      %v870 = vadd.f32 %v757, %v869
      %871 = vdwg.mxu0
      %872 = vmatpush.msra.mxu0 %v427
      %873 = vmatpush.msra.mxu0 %v426
      %874 = vmatpush.msra.mxu0 %v425
      %875 = vmatpush.msra.mxu0 %v424
      %876 = vmatpush.msra.mxu0 %v423
      %877 = vmatpush.msra.mxu0 %v422
      %878 = vmatpush.msra.mxu0 %v421
      %879 = vmatpush.msra.mxu0 %v420
      %880 = vmatpush.msra.mxu0 %v419
      %881 = vmatpush.msra.mxu0 %v418
      %882 = vmatpush.msra.mxu0 %v417
      %883 = vmatpush.msra.mxu0 %v416
      %884 = vmatpush.msra.mxu0 %v415
      %885 = vmatpush.msra.mxu0 %v414
      %886 = vmatpush.msra.mxu0 %v413
      %887 = vmatpush.msra.mxu0 %v412
      %888 = vmatmul.f32.gmra.mxu0 %v207
      %v889 = vpop.f32.mrf.mxu0
      %v890 = vadd.f32 %v777, %v889
      %891 = vmatmul.f32.gmra.mxu0 %v212
      %v892 = vpop.f32.mrf.mxu0
      %v893 = vadd.f32 %v780, %v892
      %894 = vmatmul.f32.gmra.mxu0 %v217
      %v895 = vpop.f32.mrf.mxu0
      %v896 = vadd.f32 %v783, %v895
      %897 = vmatmul.f32.gmra.mxu0 %v222
      %v898 = vpop.f32.mrf.mxu0
      %v899 = vadd.f32 %v786, %v898
      %900 = vmatmul.f32.gmra.mxu0 %v227
      %v901 = vpop.f32.mrf.mxu0
      %v902 = vadd.f32 %v789, %v901
      %903 = vmatmul.f32.gmra.mxu0 %v232
      %v904 = vpop.f32.mrf.mxu0
      %v905 = vadd.f32 %v792, %v904
      %906 = vmatmul.f32.gmra.mxu0 %v237
      %v907 = vpop.f32.mrf.mxu0
      %v908 = vadd.f32 %v795, %v907
      %909 = vmatmul.f32.gmra.mxu0 %v242
      %v910 = vpop.f32.mrf.mxu0
      %v911 = vadd.f32 %v798, %v910
      %912 = vmatmul.f32.gmra.mxu0 %v247
      %v913 = vpop.f32.mrf.mxu0
      %v914 = vadd.f32 %v801, %v913
      %915 = vmatmul.f32.gmra.mxu0 %v252
      %v916 = vpop.f32.mrf.mxu0
      %v917 = vadd.f32 %v804, %v916
      %918 = vmatmul.f32.gmra.mxu0 %v257
      %v919 = vpop.f32.mrf.mxu0
      %v920 = vadd.f32 %v807, %v919
      %921 = vmatmul.f32.gmra.mxu0 %v262
      %v922 = vpop.f32.mrf.mxu0
      %v923 = vadd.f32 %v810, %v922
      %924 = vmatmul.f32.gmra.mxu0 %v267
      %v925 = vpop.f32.mrf.mxu0
      %v926 = vadd.f32 %v813, %v925
      %927 = vmatmul.f32.gmra.mxu0 %v272
      %v928 = vpop.f32.mrf.mxu0
      %v929 = vadd.f32 %v816, %v928
      %930 = vmatmul.f32.gmra.mxu0 %v277
      %v931 = vpop.f32.mrf.mxu0
      %v932 = vadd.f32 %v819, %v931
      %933 = vmatmul.f32.gmra.mxu0 %v282
      %v934 = vpop.f32.mrf.mxu0
      %v935 = vadd.f32 %v822, %v934
      %936 = vmatmul.f32.gmra.mxu0 %v287
      %v937 = vpop.f32.mrf.mxu0
      %v938 = vadd.f32 %v825, %v937
      %939 = vmatmul.f32.gmra.mxu0 %v292
      %v940 = vpop.f32.mrf.mxu0
      %v941 = vadd.f32 %v828, %v940
      %942 = vmatmul.f32.gmra.mxu0 %v297
      %v943 = vpop.f32.mrf.mxu0
      %v944 = vadd.f32 %v831, %v943
      %945 = vmatmul.f32.gmra.mxu0 %v302
      %v946 = vpop.f32.mrf.mxu0
      %v947 = vadd.f32 %v834, %v946
      %948 = vmatmul.f32.gmra.mxu0 %v307
      %v949 = vpop.f32.mrf.mxu0
      %v950 = vadd.f32 %v837, %v949
      %951 = vmatmul.f32.gmra.mxu0 %v312
      %v952 = vpop.f32.mrf.mxu0
      %v953 = vadd.f32 %v840, %v952
      %954 = vmatmul.f32.gmra.mxu0 %v317
      %v955 = vpop.f32.mrf.mxu0
      %v956 = vadd.f32 %v843, %v955
      %957 = vmatmul.f32.gmra.mxu0 %v322
      %v958 = vpop.f32.mrf.mxu0
      %v959 = vadd.f32 %v846, %v958
      %960 = vmatmul.f32.gmra.mxu0 %v327
      %v961 = vpop.f32.mrf.mxu0
      %v962 = vadd.f32 %v849, %v961
      %963 = vmatmul.f32.gmra.mxu0 %v332
      %v964 = vpop.f32.mrf.mxu0
      %v965 = vadd.f32 %v852, %v964
      %966 = vmatmul.f32.gmra.mxu0 %v337
      %v967 = vpop.f32.mrf.mxu0
      %v968 = vadd.f32 %v855, %v967
      %969 = vmatmul.f32.gmra.mxu0 %v342
      %v970 = vpop.f32.mrf.mxu0
      %v971 = vadd.f32 %v858, %v970
      %972 = vmatmul.f32.gmra.mxu0 %v347
      %v973 = vpop.f32.mrf.mxu0
      %v974 = vadd.f32 %v861, %v973
      %975 = vmatmul.f32.gmra.mxu0 %v352
      %v976 = vpop.f32.mrf.mxu0
      %v977 = vadd.f32 %v864, %v976
      %978 = vmatmul.f32.gmra.mxu0 %v357
      %v979 = vpop.f32.mrf.mxu0
      %v980 = vadd.f32 %v867, %v979
      %981 = vmatmul.f32.gmra.mxu0 %v362
      %v982 = vpop.f32.mrf.mxu0
      %v983 = vadd.f32 %v870, %v982
      %984 = vdwg.mxu0
      %985 = vmatpush.msra.mxu0 0.0
      %986 = vmatpush.msra.mxu0 0.0
      %987 = vmatpush.msra.mxu0 0.0
      %988 = vmatpush.msra.mxu0 0.0
      %989 = vmatpush.msra.mxu0 0.0
      %990 = vmatpush.msra.mxu0 0.0
      %991 = vmatpush.msra.mxu0 0.0
      %992 = vmatpush.msra.mxu0 0.0
      %993 = vmatpush.msra.mxu0 %v435
      %994 = vmatpush.msra.mxu0 %v434
      %995 = vmatpush.msra.mxu0 %v433
      %996 = vmatpush.msra.mxu0 %v432
      %997 = vmatpush.msra.mxu0 %v431
      %998 = vmatpush.msra.mxu0 %v430
      %999 = vmatpush.msra.mxu0 %v429
      %1000 = vmatpush.msra.mxu0 %v428
      %1001 = vmatmul.f32.gmra.mxu0 %v438
      %v1002 = vpop.f32.mrf.mxu0
      %v1003 = vadd.f32 %v890, %v1002
      %1004 = vmatmul.f32.gmra.mxu0 %v441
      %v1005 = vpop.f32.mrf.mxu0
      %v1006 = vadd.f32 %v893, %v1005
      %1007 = vmatmul.f32.gmra.mxu0 %v444
      %v1008 = vpop.f32.mrf.mxu0
      %v1009 = vadd.f32 %v896, %v1008
      %1010 = vmatmul.f32.gmra.mxu0 %v447
      %v1011 = vpop.f32.mrf.mxu0
      %v1012 = vadd.f32 %v899, %v1011
      %1013 = vmatmul.f32.gmra.mxu0 %v450
      %v1014 = vpop.f32.mrf.mxu0
      %v1015 = vadd.f32 %v902, %v1014
      %1016 = vmatmul.f32.gmra.mxu0 %v453
      %v1017 = vpop.f32.mrf.mxu0
      %v1018 = vadd.f32 %v905, %v1017
      %1019 = vmatmul.f32.gmra.mxu0 %v456
      %v1020 = vpop.f32.mrf.mxu0
      %v1021 = vadd.f32 %v908, %v1020
      %1022 = vmatmul.f32.gmra.mxu0 %v459
      %v1023 = vpop.f32.mrf.mxu0
      %v1024 = vadd.f32 %v911, %v1023
      %1025 = vmatmul.f32.gmra.mxu0 %v462
      %v1026 = vpop.f32.mrf.mxu0
      %v1027 = vadd.f32 %v914, %v1026
      %1028 = vmatmul.f32.gmra.mxu0 %v465
      %v1029 = vpop.f32.mrf.mxu0
      %v1030 = vadd.f32 %v917, %v1029
      %1031 = vmatmul.f32.gmra.mxu0 %v468
      %v1032 = vpop.f32.mrf.mxu0
      %v1033 = vadd.f32 %v920, %v1032
      %1034 = vmatmul.f32.gmra.mxu0 %v471
      %v1035 = vpop.f32.mrf.mxu0
      %v1036 = vadd.f32 %v923, %v1035
      %1037 = vmatmul.f32.gmra.mxu0 %v474
      %v1038 = vpop.f32.mrf.mxu0
      %v1039 = vadd.f32 %v926, %v1038
      %1040 = vmatmul.f32.gmra.mxu0 %v477
      %v1041 = vpop.f32.mrf.mxu0
      %v1042 = vadd.f32 %v929, %v1041
      %1043 = vmatmul.f32.gmra.mxu0 %v480
      %v1044 = vpop.f32.mrf.mxu0
      %v1045 = vadd.f32 %v932, %v1044
      %1046 = vmatmul.f32.gmra.mxu0 %v483
      %v1047 = vpop.f32.mrf.mxu0
      %v1048 = vadd.f32 %v935, %v1047
      %1049 = vmatmul.f32.gmra.mxu0 %v486
      %v1050 = vpop.f32.mrf.mxu0
      %v1051 = vadd.f32 %v938, %v1050
      %1052 = vmatmul.f32.gmra.mxu0 %v489
      %v1053 = vpop.f32.mrf.mxu0
      %v1054 = vadd.f32 %v941, %v1053
      %1055 = vmatmul.f32.gmra.mxu0 %v492
      %v1056 = vpop.f32.mrf.mxu0
      %v1057 = vadd.f32 %v944, %v1056
      %1058 = vmatmul.f32.gmra.mxu0 %v495
      %v1059 = vpop.f32.mrf.mxu0
      %v1060 = vadd.f32 %v947, %v1059
      %1061 = vmatmul.f32.gmra.mxu0 %v498
      %v1062 = vpop.f32.mrf.mxu0
      %v1063 = vadd.f32 %v950, %v1062
      %1064 = vmatmul.f32.gmra.mxu0 %v501
      %v1065 = vpop.f32.mrf.mxu0
      %v1066 = vadd.f32 %v953, %v1065
      %1067 = vmatmul.f32.gmra.mxu0 %v504
      %v1068 = vpop.f32.mrf.mxu0
      %v1069 = vadd.f32 %v956, %v1068
      %1070 = vmatmul.f32.gmra.mxu0 %v507
      %v1071 = vpop.f32.mrf.mxu0
      %v1072 = vadd.f32 %v959, %v1071
      %1073 = vmatmul.f32.gmra.mxu0 %v510
      %v1074 = vpop.f32.mrf.mxu0
      %v1075 = vadd.f32 %v962, %v1074
      %1076 = vmatmul.f32.gmra.mxu0 %v513
      %v1077 = vpop.f32.mrf.mxu0
      %v1078 = vadd.f32 %v965, %v1077
      %1079 = vmatmul.f32.gmra.mxu0 %v516
      %v1080 = vpop.f32.mrf.mxu0
      %v1081 = vadd.f32 %v968, %v1080
      %1082 = vmatmul.f32.gmra.mxu0 %v519
      %v1083 = vpop.f32.mrf.mxu0
      %v1084 = vadd.f32 %v971, %v1083
      %1085 = vmatmul.f32.gmra.mxu0 %v522
      %v1086 = vpop.f32.mrf.mxu0
      %v1087 = vadd.f32 %v974, %v1086
      %1088 = vmatmul.f32.gmra.mxu0 %v525
      %v1089 = vpop.f32.mrf.mxu0
      %v1090 = vadd.f32 %v977, %v1089
      %1091 = vmatmul.f32.gmra.mxu0 %v528
      %v1092 = vpop.f32.mrf.mxu0
      %v1093 = vadd.f32 %v980, %v1092
      %1094 = vmatmul.f32.gmra.mxu0 %v531
      %v1095 = vpop.f32.mrf.mxu0
      %v1096 = vadd.f32 %v983, %v1095
      %1097 = vdwg.mxu0
      %v1098 = vld [vmem:[%s2] sm:$0x1]
      %v1100 = vperm.slane %v1098, 0
      %v1102 = vmul.f32 %v1003, %v1100
      %v1103 = vmul.f32 %v1006, %v1100
      %v1104 = vmul.f32 %v1009, %v1100
      %v1105 = vmul.f32 %v1012, %v1100
      %v1106 = vmul.f32 %v1015, %v1100
      %v1107 = vmul.f32 %v1018, %v1100
      %v1108 = vmul.f32 %v1021, %v1100
      %v1109 = vmul.f32 %v1024, %v1100
      %v1110 = vmul.f32 %v1027, %v1100
      %v1111 = vmul.f32 %v1030, %v1100
      %v1112 = vmul.f32 %v1033, %v1100
      %v1113 = vmul.f32 %v1036, %v1100
      %v1114 = vmul.f32 %v1039, %v1100
      %v1115 = vmul.f32 %v1042, %v1100
      %v1116 = vmul.f32 %v1045, %v1100
      %v1117 = vmul.f32 %v1048, %v1100
      %v1118 = vmul.f32 %v1051, %v1100
      %v1119 = vmul.f32 %v1054, %v1100
      %v1120 = vmul.f32 %v1057, %v1100
      %v1121 = vmul.f32 %v1060, %v1100
      %v1122 = vmul.f32 %v1063, %v1100
      %v1123 = vmul.f32 %v1066, %v1100
      %v1124 = vmul.f32 %v1069, %v1100
      %v1125 = vmul.f32 %v1072, %v1100
      %v1126 = vmul.f32 %v1075, %v1100
      %v1127 = vmul.f32 %v1078, %v1100
      %v1128 = vmul.f32 %v1081, %v1100
      %v1129 = vmul.f32 %v1084, %v1100
      %v1130 = vmul.f32 %v1087, %v1100
      %v1131 = vmul.f32 %v1090, %v1100
      %v1132 = vmul.f32 %v1093, %v1100
      %v1133 = vmul.f32 %v1096, %v1100
      %v1134 = vld [vmem:[%s3] sm:$0x1]
      %v1136 = vperm.slane %v1134, 0
      %v1138 = vadd.f32 %v1102, %v1136
      %v1139 = vadd.f32 %v1103, %v1136
      %v1140 = vadd.f32 %v1104, %v1136
      %v1141 = vadd.f32 %v1105, %v1136
      %v1142 = vadd.f32 %v1106, %v1136
      %v1143 = vadd.f32 %v1107, %v1136
      %v1144 = vadd.f32 %v1108, %v1136
      %v1145 = vadd.f32 %v1109, %v1136
      %v1146 = vadd.f32 %v1110, %v1136
      %v1147 = vadd.f32 %v1111, %v1136
      %v1148 = vadd.f32 %v1112, %v1136
      %v1149 = vadd.f32 %v1113, %v1136
      %v1150 = vadd.f32 %v1114, %v1136
      %v1151 = vadd.f32 %v1115, %v1136
      %v1152 = vadd.f32 %v1116, %v1136
      %v1153 = vadd.f32 %v1117, %v1136
      %v1154 = vadd.f32 %v1118, %v1136
      %v1155 = vadd.f32 %v1119, %v1136
      %v1156 = vadd.f32 %v1120, %v1136
      %v1157 = vadd.f32 %v1121, %v1136
      %v1158 = vadd.f32 %v1122, %v1136
      %v1159 = vadd.f32 %v1123, %v1136
      %v1160 = vadd.f32 %v1124, %v1136
      %v1161 = vadd.f32 %v1125, %v1136
      %v1162 = vadd.f32 %v1126, %v1136
      %v1163 = vadd.f32 %v1127, %v1136
      %v1164 = vadd.f32 %v1128, %v1136
      %v1165 = vadd.f32 %v1129, %v1136
      %v1166 = vadd.f32 %v1130, %v1136
      %v1167 = vadd.f32 %v1131, %v1136
      %v1168 = vadd.f32 %v1132, %v1136
      %v1169 = vadd.f32 %v1133, %v1136
      %v1170 = vmax.f32 %v1138, 0.0
      %v1171 = vmax.f32 %v1139, 0.0
      %v1172 = vmax.f32 %v1140, 0.0
      %v1173 = vmax.f32 %v1141, 0.0
      %v1174 = vmax.f32 %v1142, 0.0
      %v1175 = vmax.f32 %v1143, 0.0
      %v1176 = vmax.f32 %v1144, 0.0
      %v1177 = vmax.f32 %v1145, 0.0
      %v1178 = vmax.f32 %v1146, 0.0
      %v1179 = vmax.f32 %v1147, 0.0
      %v1180 = vmax.f32 %v1148, 0.0
      %v1181 = vmax.f32 %v1149, 0.0
      %v1182 = vmax.f32 %v1150, 0.0
      %v1183 = vmax.f32 %v1151, 0.0
      %v1184 = vmax.f32 %v1152, 0.0
      %v1185 = vmax.f32 %v1153, 0.0
      %v1186 = vmax.f32 %v1154, 0.0
      %v1187 = vmax.f32 %v1155, 0.0
      %v1188 = vmax.f32 %v1156, 0.0
      %v1189 = vmax.f32 %v1157, 0.0
      %v1190 = vmax.f32 %v1158, 0.0
      %v1191 = vmax.f32 %v1159, 0.0
      %v1192 = vmax.f32 %v1160, 0.0
      %v1193 = vmax.f32 %v1161, 0.0
      %v1194 = vmax.f32 %v1162, 0.0
      %v1195 = vmax.f32 %v1163, 0.0
      %v1196 = vmax.f32 %v1164, 0.0
      %v1197 = vmax.f32 %v1165, 0.0
      %v1198 = vmax.f32 %v1166, 0.0
      %v1199 = vmax.f32 %v1167, 0.0
      %v1200 = vmax.f32 %v1168, 0.0
      %v1201 = vmax.f32 %v1169, 0.0
      %vm1202 = vcmask 130048
      %1203 = vst.msk [vmem:[%s202] sm:$0xff] %vm1202, %v1170
      %1204 = vst.msk [vmem:[%s202 + $0x8] sm:$0xff] %vm1202, %v1171
      %1205 = vst.msk [vmem:[%s202 + $0x10] sm:$0xff] %vm1202, %v1172
      %1206 = vst.msk [vmem:[%s202 + $0x18] sm:$0xff] %vm1202, %v1173
      %1207 = vst.msk [vmem:[%s202 + $0x20] sm:$0xff] %vm1202, %v1174
      %1208 = vst.msk [vmem:[%s202 + $0x28] sm:$0xff] %vm1202, %v1175
      %1209 = vst.msk [vmem:[%s202 + $0x30] sm:$0xff] %vm1202, %v1176
      %1210 = vst.msk [vmem:[%s202 + $0x38] sm:$0xff] %vm1202, %v1177
      %1211 = vst.msk [vmem:[%s202 + $0x40] sm:$0xff] %vm1202, %v1178
      %1212 = vst.msk [vmem:[%s202 + $0x48] sm:$0xff] %vm1202, %v1179
      %1213 = vst.msk [vmem:[%s202 + $0x50] sm:$0xff] %vm1202, %v1180
      %1214 = vst.msk [vmem:[%s202 + $0x58] sm:$0xff] %vm1202, %v1181
      %1215 = vst.msk [vmem:[%s202 + $0x60] sm:$0xff] %vm1202, %v1182
      %1216 = vst.msk [vmem:[%s202 + $0x68] sm:$0xff] %vm1202, %v1183
      %1217 = vst.msk [vmem:[%s202 + $0x70] sm:$0xff] %vm1202, %v1184
      %1218 = vst.msk [vmem:[%s202 + $0x78] sm:$0xff] %vm1202, %v1185
      %1219 = vst.msk [vmem:[%s202 + $0x80] sm:$0xff] %vm1202, %v1186
      %1220 = vst.msk [vmem:[%s202 + $0x88] sm:$0xff] %vm1202, %v1187
      %1221 = vst.msk [vmem:[%s202 + $0x90] sm:$0xff] %vm1202, %v1188
      %1222 = vst.msk [vmem:[%s202 + $0x98] sm:$0xff] %vm1202, %v1189
      %1223 = vst.msk [vmem:[%s202 + $0xa0] sm:$0xff] %vm1202, %v1190
      %1224 = vst.msk [vmem:[%s202 + $0xa8] sm:$0xff] %vm1202, %v1191
      %1225 = vst.msk [vmem:[%s202 + $0xb0] sm:$0xff] %vm1202, %v1192
      %1226 = vst.msk [vmem:[%s202 + $0xb8] sm:$0xff] %vm1202, %v1193
      %1227 = vst.msk [vmem:[%s202 + $0xc0] sm:$0xff] %vm1202, %v1194
      %1228 = vst.msk [vmem:[%s202 + $0xc8] sm:$0xff] %vm1202, %v1195
      %1229 = vst.msk [vmem:[%s202 + $0xd0] sm:$0xff] %vm1202, %v1196
      %1230 = vst.msk [vmem:[%s202 + $0xd8] sm:$0xff] %vm1202, %v1197
      %1231 = vst.msk [vmem:[%s202 + $0xe0] sm:$0xff] %vm1202, %v1198
      %1232 = vst.msk [vmem:[%s202 + $0xe8] sm:$0xff] %vm1202, %v1199
      %1233 = vst.msk [vmem:[%s202 + $0xf0] sm:$0xff] %vm1202, %v1200
      %1234 = vst.msk [vmem:[%s202 + $0xf8] sm:$0xff] %vm1202, %v1201
      %s1235 = smul.u32 32, %s15
      %p1236 = scmp.lt.s32.totalorder %s1235, 63
      %s1237 = scalar_select %p1236, %s1235, 63
      %s1238 = smul.addr %s1237, 8
      %s1239 = scalar_lea.vmem %s4, %s1238
      // Predicated region
      $region37: #{tpu_custom_call.1} parent=35 // pred_check
        %p1240 = pneg %p122
      $region38: #{tpu_custom_call.1} parent=35 // pred_check_branch
        %1242 = sbr.rel (%p1240) target = $region40
      $region39: #{tpu_custom_call.1} parent=35 // pred_region
        %s1243 = smul.u32 32, %s15
      $region40: #{tpu_custom_call.1} parent=35 // pred_fallthru
        _
    $region36: #{tpu_custom_call.1} parent=5 // pred_fallthru
      _
    %p1244 = scmp.le.s32.totalorder 2, %s10
    // Predicated region
    $region41: #{tpu_custom_call.1} parent=5 // pred_check
      %p1245 = pneg %p1244
    $region42: #{tpu_custom_call.1} parent=5 // pred_check_branch
      %1247 = sbr.rel (%p1245) target = $region44
    $region43: #{tpu_custom_call.1} parent=5 // pred_region
      %s1248 = ssub.s32 %s10, 2
      // Predicated region
      $region45: #{tpu_custom_call.1} parent=43 // pred_check
        %p1249 = pneg %p128
      $region46: #{tpu_custom_call.1} parent=43 // pred_check_branch
        %1251 = sbr.rel (%p1249) target = $region48
      $region47: #{tpu_custom_call.1} parent=43 // pred_region
        %s1252 = smul.u32 32, %s16
        %p1253 = scmp.lt.s32.totalorder %s1252, 63
        %s1254 = scalar_select %p1253, %s1252, 63
        %s1255 = smul.addr %s1254, 8
        %s1256 = scalar_lea.vmem %s4, %s1255
      $region48: #{tpu_custom_call.1} parent=43 // pred_fallthru
        _
    $region44: #{tpu_custom_call.1} parent=5 // pred_fallthru
      _
  $region6: #{tpu_custom_call.1} parent=0 // loop_footer
    %s14 = sadd.s32 1, %s10
  $region7: #{tpu_custom_call.1} parent=0 // loop_footer_branch
    %9 = sbr.rel target = $region3
  $region8: #{tpu_custom_call.1} parent=0 // loop_exit
    _

</llo_original>
